<compile_context>
chip_gen: v7x
topology: tpu7x:2x2x1
jax: 0.10.0
libtpu: 0.0.40
codegen_flags: <defaults>
</compile_context>

<pallas_src>
import jax
import jax.numpy as jnp
from jax import lax
from jax.experimental import pallas as pl
from jax.experimental.pallas import tpu as pltpu


def _q_mlp_kernel(x_ref, w1t_ref, b1_ref, w2t_ref, b2_ref, w3r_ref, out_ref):
    """Fused 3-layer MLP for one batch tile of TB rows (batch on lanes).

    x_ref:   (TB, D)   concatenated [obs, act] tile
    w1t_ref: (H1, D)   b1_ref: (H1, 1)
    w2t_ref: (H2, H1)  b2_ref: (H2, 1)
    w3r_ref: (8, H2)   row 0 = W3^T, rows 1..7 zero padding
    out_ref: (1, TB)   lane-dense q row (final bias b3 added in the wrapper)
    """
    # Layer 1: contract the feature dim of both operands -> (H1, TB).
    h1 = lax.dot_general(
        w1t_ref[...], x_ref[...],
        dimension_numbers=(((1,), (1,)), ((), ())),
        preferred_element_type=jnp.float32,
    )
    h1 = jnp.maximum(h1 + b1_ref[...], 0.0)            # (H1, TB) lane-dense

    # Layer 2: plain matmul in transposed form -> (H2, TB).
    h2 = jnp.dot(w2t_ref[...], h1, preferred_element_type=jnp.float32)
    h2 = jnp.maximum(h2 + b2_ref[...], 0.0)            # (H2, TB)

    # Layer 3 (out_features == 1): (8, H2) @ (H2, TB) -> (8, TB); only row 0
    # is real (the rest are zero padding the MXU absorbs for free).
    q8 = jnp.dot(w3r_ref[...], h2, preferred_element_type=jnp.float32)
    out_ref[...] = q8[0:1, :].astype(out_ref.dtype)


def _round_up(x, m):
    return (x + m - 1) // m * m


def _pick_tb(bp, block_b):
    """Largest multiple of 128 that divides bp and is <= block_b."""
    best = 128
    n = bp // 128
    for d in range(1, n + 1):
        if n % d == 0 and d * 128 <= block_b:
            best = d * 128
    return best


def mlp_q_function(obs, act, params, *, block_b=512):
    """Pallas forward for MLPQFunction; returns q of shape (B,)."""
    (w1, b1), (w2, b2), (w3, b3) = params
    B, obs_dim = obs.shape
    act_dim = act.shape[-1]
    D = obs_dim + act_dim
    H1 = w1.shape[1]
    H2 = w2.shape[1]
    assert w1.shape[0] == D and w2.shape[0] == H1 and w3.shape == (H2, 1)

    # --- batch tiling: pad to a multiple of 128 (lane-dense q output), then
    # pick the largest 128-multiple tile that divides Bp and fits block_b.
    block_b = max(int(block_b), 128)
    Bp = _round_up(max(B, 1), 128)
    TB = Bp if Bp <= block_b else _pick_tb(Bp, block_b)
    grid = (Bp // TB,)

    # Single concatenated input stream; pad fuses with the concat in XLA.
    x = jnp.concatenate([obs, act], axis=-1).astype(jnp.float32)
    if Bp != B:
        x = jnp.pad(x, ((0, Bp - B), (0, 0)))

    # Transposed (out_features-major) weights -> lane-dense (H, TB) activations.
    w1t = jnp.asarray(w1, jnp.float32).T                  # (H1, D)
    w2t = jnp.asarray(w2, jnp.float32).T                  # (H2, H1)
    w3r = jnp.zeros((8, H2), jnp.float32).at[0].set(
        jnp.asarray(w3[:, 0], jnp.float32))               # (8, H2), row 0 real
    b1c = jnp.asarray(b1, jnp.float32).reshape(H1, 1)
    b2c = jnp.asarray(b2, jnp.float32).reshape(H2, 1)

    flops = 2 * Bp * (D * H1 + H1 * H2 + 8 * H2)
    bytes_accessed = int(4 * (x.size + w1t.size + w2t.size + w3r.size
                              + b1c.size + b2c.size + Bp))

    # VMEM footprint estimate (double-buffered streams + f32 intermediates).
    vmem_est = int(
        2 * 4 * (TB * D + TB)                              # x tile + out tile
        + 2 * 4 * (w1t.size + w2t.size + w3r.size + b1c.size + b2c.size)
        + 4 * TB * (H1 + H2 + 8)                           # h1 / h2 / q8
    )
    vmem_limit = None
    if vmem_est > 12 * 1024 * 1024:                        # near v5e's 16 MiB default
        vmem_limit = min(_round_up(2 * vmem_est, 1 << 20), 64 * 1024 * 1024)
    # TODO(synk): for very wide hidden layers, single-buffer the constant
    # weight specs (pipeline_mode=pl.Buffered(1)) to halve their footprint.

    const = lambda i: (0, 0)   # weights / biases: VMEM-resident across steps

    q_row = pl.pallas_call(
        _q_mlp_kernel,
        out_shape=jax.ShapeDtypeStruct((1, Bp), jnp.float32),
        grid=grid,
        in_specs=[
            pl.BlockSpec((TB, D), lambda i: (i, 0)),       # x tile (per step)
            pl.BlockSpec((H1, D), const),                  # W1^T
            pl.BlockSpec((H1, 1), const),                  # b1
            pl.BlockSpec((H2, H1), const),                 # W2^T
            pl.BlockSpec((H2, 1), const),                  # b2
            pl.BlockSpec((8, H2), const),                  # W3 rows (padded)
        ],
        out_specs=pl.BlockSpec((1, TB), lambda i: (0, i)),  # lane-dense q row
        compiler_params=pltpu.CompilerParams(
            dimension_semantics=("parallel",),
            vmem_limit_bytes=vmem_limit,
        ),
        cost_estimate=pl.CostEstimate(
            flops=flops, transcendentals=0, bytes_accessed=bytes_accessed),
    )(x, w1t, b1c, w2t, b2c, w3r)

    # Fold the scalar output bias here (saves one VMEM stream in the kernel)
    # and drop batch padding.  Matches torch.squeeze(q, -1).
    return q_row.reshape(Bp)[:B] + jnp.asarray(b3, jnp.float32).reshape(())


def init_params(key, obs_dim, act_dim, hidden_sizes):
    """Weight layout (in_dim, out_dim); bias (1, out_dim). f32 master copy."""
    sizes = [obs_dim + act_dim] + list(hidden_sizes) + [1]
    params = []
    for j in range(len(sizes) - 1):
        key, wk, bk = jax.random.split(key, 3)
        bound = 1.0 / jnp.sqrt(sizes[j])   # mimic PyTorch Linear default range
        w = jax.random.uniform(wk, (sizes[j], sizes[j + 1]), jnp.float32, -bound, bound)
        b = jax.random.uniform(bk, (1, sizes[j + 1]), jnp.float32, -bound, bound)
        params.append((w, b))
    return params


def reference_q(obs, act, params):
    """Pure-JAX f32 reference (exact PyTorch-equivalent forward)."""
    x = jnp.concatenate([obs, act], axis=-1)
    (w1, b1), (w2, b2), (w3, b3) = params
    h1 = jnp.maximum(x @ w1 + b1, 0.0)
    h2 = jnp.maximum(h1 @ w2 + b2, 0.0)
    return jnp.squeeze(h2 @ w3 + b3, axis=-1)


if __name__ == "__main__":
    key = jax.random.PRNGKey(0)
    obs_dim, act_dim, hidden_sizes = 8, 4, [32, 32]

    key, pk = jax.random.split(key)
    params = init_params(pk, obs_dim, act_dim, hidden_sizes)

    # Small single-tile case (B=8 -> padded to one 128-row tile).
    key, ok, ak = jax.random.split(key, 3)
    obs = jax.random.normal(ok, (8, obs_dim), jnp.float32)
    act = jax.random.normal(ak, (8, act_dim), jnp.float32)
    q = jax.block_until_ready(mlp_q_function(obs, act, params))
    q_ref = reference_q(obs, act, params)
    assert q.shape == (8,), q.shape
    assert jnp.allclose(q, q_ref, atol=5e-2, rtol=5e-2), (q, q_ref)

    # Larger case: B=600 -> Bp=640, five 128-row tiles (batch grid, padding,
    # lane-dense output, megacore-parallel grid on v7x).
    key, ok, ak = jax.random.split(key, 3)
    obs = jax.random.normal(ok, (600, obs_dim), jnp.float32)
    act = jax.random.normal(ak, (600, act_dim), jnp.float32)
    q = jax.block_until_ready(mlp_q_function(obs, act, params, block_b=128))
    q_ref = reference_q(obs, act, params)
    assert q.shape == (600,), q.shape
    assert jnp.allclose(q, q_ref, atol=5e-2, rtol=5e-2), (q, q_ref)

    print("KERNEL_OK")
</pallas_src>

<mosaic_0001>
module attributes {stable_mosaic.version = 11 : i64} {
  func.func @_q_mlp_kernel(%arg0: i32, %arg1: memref<128x12xf32, #tpu.memory_space<vmem>>, %arg2: memref<32x12xf32, #tpu.memory_space<vmem>>, %arg3: memref<32x1xf32, #tpu.memory_space<vmem>>, %arg4: memref<32x32xf32, #tpu.memory_space<vmem>>, %arg5: memref<32x1xf32, #tpu.memory_space<vmem>>, %arg6: memref<8x32xf32, #tpu.memory_space<vmem>>, %arg7: memref<1x128xf32, #tpu.memory_space<vmem>>) attributes {dimension_semantics = [#tpu.dimension_semantics<parallel>], iteration_bounds = array<i64: 1>, scalar_prefetch = 0 : i64, scratch_operands = 0 : i64, tpu.core_type = #tpu.core_type<tc>, window_params = [{transform_indices = @transform_0, window_bounds = array<i64: 128, 12>}, {pipeline_mode = #tpu.pipeline_mode<synchronous>, transform_indices = @transform_1, window_bounds = array<i64: 32, 12>}, {pipeline_mode = #tpu.pipeline_mode<synchronous>, transform_indices = @transform_2, window_bounds = array<i64: 32, 1>}, {pipeline_mode = #tpu.pipeline_mode<synchronous>, transform_indices = @transform_3, window_bounds = array<i64: 32, 32>}, {pipeline_mode = #tpu.pipeline_mode<synchronous>, transform_indices = @transform_4, window_bounds = array<i64: 32, 1>}, {pipeline_mode = #tpu.pipeline_mode<synchronous>, transform_indices = @transform_5, window_bounds = array<i64: 8, 32>}, {transform_indices = @transform_6, window_bounds = array<i64: 1, 128>}]} {
    %c0 = arith.constant 0 : index
    %c0_0 = arith.constant 0 : index
    %0 = vector.load %arg2[%c0, %c0_0] : memref<32x12xf32, #tpu.memory_space<vmem>>, vector<32x12xf32>
    %c0_1 = arith.constant 0 : index
    %c0_2 = arith.constant 0 : index
    %1 = vector.load %arg1[%c0_1, %c0_2] : memref<128x12xf32, #tpu.memory_space<vmem>>, vector<128x12xf32>
    %cst = arith.constant dense<0.000000e+00> : vector<32x128xf32>
    %2 = tpu.matmul %0, %1, %cst {dimension_numbers = #tpu.dot_dimension_numbers<[1], [1], [0], [0], [0, 0, 1, 0], [], []>} : vector<32x12xf32>, vector<128x12xf32>, vector<32x128xf32> -> vector<32x128xf32>
    %c0_3 = arith.constant 0 : index
    %c0_4 = arith.constant 0 : index
    %3 = vector.load %arg3[%c0_3, %c0_4] : memref<32x1xf32, #tpu.memory_space<vmem>>, vector<32x1xf32>
    %4 = vector.broadcast %3 : vector<32x1xf32> to vector<32x128xf32>
    %5 = arith.addf %2, %4 : vector<32x128xf32>
    %cst_5 = arith.constant 0.000000e+00 : f32
    %6 = vector.broadcast %cst_5 : f32 to vector<32x128xf32>
    %7 = arith.maximumf %5, %6 : vector<32x128xf32>
    %c0_6 = arith.constant 0 : index
    %c0_7 = arith.constant 0 : index
    %8 = vector.load %arg4[%c0_6, %c0_7] : memref<32x32xf32, #tpu.memory_space<vmem>>, vector<32x32xf32>
    %cst_8 = arith.constant dense<0.000000e+00> : vector<32x128xf32>
    %9 = tpu.matmul %8, %7, %cst_8 {dimension_numbers = #tpu.dot_dimension_numbers<[1], [0], [0], [1], [0, 0, 1, 1], [], []>} : vector<32x32xf32>, vector<32x128xf32>, vector<32x128xf32> -> vector<32x128xf32>
    %c0_9 = arith.constant 0 : index
    %c0_10 = arith.constant 0 : index
    %10 = vector.load %arg5[%c0_9, %c0_10] : memref<32x1xf32, #tpu.memory_space<vmem>>, vector<32x1xf32>
    %11 = vector.broadcast %10 : vector<32x1xf32> to vector<32x128xf32>
    %12 = arith.addf %9, %11 : vector<32x128xf32>
    %cst_11 = arith.constant 0.000000e+00 : f32
    %13 = vector.broadcast %cst_11 : f32 to vector<32x128xf32>
    %14 = arith.maximumf %12, %13 : vector<32x128xf32>
    %c0_12 = arith.constant 0 : index
    %c0_13 = arith.constant 0 : index
    %15 = vector.load %arg6[%c0_12, %c0_13] : memref<8x32xf32, #tpu.memory_space<vmem>>, vector<8x32xf32>
    %cst_14 = arith.constant dense<0.000000e+00> : vector<8x128xf32>
    %16 = tpu.matmul %15, %14, %cst_14 {dimension_numbers = #tpu.dot_dimension_numbers<[1], [0], [0], [1], [0, 0, 1, 1], [], []>} : vector<8x32xf32>, vector<32x128xf32>, vector<8x128xf32> -> vector<8x128xf32>
    %17 = vector.extract_strided_slice %16 {offsets = [0, 0], sizes = [1, 128], strides = [1, 1]} : vector<8x128xf32> to vector<1x128xf32>
    %c0_15 = arith.constant 0 : index
    %c0_16 = arith.constant 0 : index
    %18 = vector.load %arg7[%c0_15, %c0_16] : memref<1x128xf32, #tpu.memory_space<vmem>>, vector<1x128xf32>
    tpu.vector_store %arg7[%c0_15, %c0_16], %17 {strides = array<i32>} : memref<1x128xf32, #tpu.memory_space<vmem>>, vector<1x128xf32>,
    return
  }
  func.func @transform_0(%arg0: i32) -> (i32, i32) {
    %c0_i32 = arith.constant 0 : i32
    %c0_i32_0 = arith.constant 0 : i32
    return %arg0, %c0_i32 : i32, i32
  }
  func.func @transform_1(%arg0: i32) -> (i32, i32) {
    %c0_i32 = arith.constant 0 : i32
    %c0_i32_0 = arith.constant 0 : i32
    %c0_i32_1 = arith.constant 0 : i32
    return %c0_i32, %c0_i32_0 : i32, i32
  }
  func.func @transform_2(%arg0: i32) -> (i32, i32) {
    %c0_i32 = arith.constant 0 : i32
    %c0_i32_0 = arith.constant 0 : i32
    %c0_i32_1 = arith.constant 0 : i32
    return %c0_i32, %c0_i32_0 : i32, i32
  }
  func.func @transform_3(%arg0: i32) -> (i32, i32) {
    %c0_i32 = arith.constant 0 : i32
    %c0_i32_0 = arith.constant 0 : i32
    %c0_i32_1 = arith.constant 0 : i32
    return %c0_i32, %c0_i32_0 : i32, i32
  }
  func.func @transform_4(%arg0: i32) -> (i32, i32) {
    %c0_i32 = arith.constant 0 : i32
    %c0_i32_0 = arith.constant 0 : i32
    %c0_i32_1 = arith.constant 0 : i32
    return %c0_i32, %c0_i32_0 : i32, i32
  }
  func.func @transform_5(%arg0: i32) -> (i32, i32) {
    %c0_i32 = arith.constant 0 : i32
    %c0_i32_0 = arith.constant 0 : i32
    %c0_i32_1 = arith.constant 0 : i32
    return %c0_i32, %c0_i32_0 : i32, i32
  }
  func.func @transform_6(%arg0: i32) -> (i32, i32) {
    %c0_i32 = arith.constant 0 : i32
    %c0_i32_0 = arith.constant 0 : i32
    return %c0_i32, %arg0 : i32, i32
  }
}

</mosaic_0001>

<llo_original>
// kernel: tpu_custom_call.1
$region0: #{tpu_custom_call.1}
  #allocation0 [shape = 'u32[]', space=smem, size = 0x4, offset = 0x4, fixed_abs, tag = 'smem constant byte address 0x4 - core index']
  #allocation1 [shape = 'u32[144,128]{1,0:T(1,128)}', space=vmem, size = 0x12000, scoped, tag = 'internal scratch']
  %s0 = inlined_call_operand.vmem [shape: f32[128,12], index: 0, kind: input, shape index: {}]
  %s1 = inlined_call_operand.vmem [shape: f32[32,12], index: 1, kind: input, shape index: {}]
  %s2 = inlined_call_operand.vmem [shape: f32[32,1], index: 2, kind: input, shape index: {}]
  %s3 = inlined_call_operand.vmem [shape: f32[32,32], index: 3, kind: input, shape index: {}]
  %s4 = inlined_call_operand.vmem [shape: f32[32,1], index: 4, kind: input, shape index: {}]
  %s5 = inlined_call_operand.vmem [shape: f32[8,32], index: 5, kind: input, shape index: {}]
  %s6 = inlined_call_operand.hbm [shape: f32[1,128], index: 6, kind: output, shape index: {}]
  %s7 = sld [smem:[#allocation0]]
  $region34: #{tpu_custom_call.1} parent=0
    _
  %s9 = ssub.s32 1, %s7
  %s10 = scalar_select 0, %s9, %s7
  $region1: #{tpu_custom_call.1} parent=0
    #allocation2 [shape = 'u8[512]{0}', space=vmem, size = 0x400, scoped, tag = 'output window, operand 0, single buffered']
    #allocation3 [shape = 's32[1]{0}', space=sflag, size = 0x4, scoped, tag = 'scoped memory for tpu_custom_call.1']
    %11 = vsyncpa [#allocation3], 0
    // Predicated region
    $region2: #{tpu_custom_call.1} parent=1 // pred_check
      _
    $region3: #{tpu_custom_call.1} parent=1 // pred_check_branch
      %13 = sbr.rel (0) target = $region5
    $region4: #{tpu_custom_call.1} parent=1 // pred_region
      _
    $region5: #{tpu_custom_call.1} parent=1 // pred_fallthru
      _
    // Predicated region
    $region6: #{tpu_custom_call.1} parent=1 // pred_check
      _
    $region7: #{tpu_custom_call.1} parent=1 // pred_check_branch
      %15 = sbr.rel (0) target = $region9
    $region8: #{tpu_custom_call.1} parent=1 // pred_region
      _
    $region9: #{tpu_custom_call.1} parent=1 // pred_fallthru
      _
    // Predicated region
    $region10: #{tpu_custom_call.1} parent=1 // pred_check
      _
    $region11: #{tpu_custom_call.1} parent=1 // pred_check_branch
      %17 = sbr.rel (0) target = $region13
    $region12: #{tpu_custom_call.1} parent=1 // pred_region
      _
    $region13: #{tpu_custom_call.1} parent=1 // pred_fallthru
      _
    // Predicated region
    $region14: #{tpu_custom_call.1} parent=1 // pred_check
      _
    $region15: #{tpu_custom_call.1} parent=1 // pred_check_branch
      %19 = sbr.rel (0) target = $region17
    $region16: #{tpu_custom_call.1} parent=1 // pred_region
      _
    $region17: #{tpu_custom_call.1} parent=1 // pred_fallthru
      _
    // Predicated region
    $region18: #{tpu_custom_call.1} parent=1 // pred_check
      _
    $region19: #{tpu_custom_call.1} parent=1 // pred_check_branch
      %21 = sbr.rel (0) target = $region21
    $region20: #{tpu_custom_call.1} parent=1 // pred_region
      _
    $region21: #{tpu_custom_call.1} parent=1 // pred_fallthru
      _
    // Predicated region
    $region22: #{tpu_custom_call.1} parent=1 // pred_check
      _
    $region23: #{tpu_custom_call.1} parent=1 // pred_check_branch
      %23 = sbr.rel (0) target = $region25
    $region24: #{tpu_custom_call.1} parent=1 // pred_region
      _
    $region25: #{tpu_custom_call.1} parent=1 // pred_fallthru
      _
    %v24 = vld [vmem:[%s1] sm:$0xff]
    %v25 = vld [vmem:[%s1 + $0x8] sm:$0xff]
    %v26 = vld [vmem:[%s1 + $0x10] sm:$0xff]
    %v27 = vld [vmem:[%s1 + $0x18] sm:$0xff]
    %v28 = vld [vmem:[%s0] sm:$0xff]
    %v29 = vld [vmem:[%s0 + $0x8] sm:$0xff]
    %v30 = vld [vmem:[%s0 + $0x10] sm:$0xff]
    %v31 = vld [vmem:[%s0 + $0x18] sm:$0xff]
    %v32 = vld [vmem:[%s0 + $0x20] sm:$0xff]
    %v33 = vld [vmem:[%s0 + $0x28] sm:$0xff]
    %v34 = vld [vmem:[%s0 + $0x30] sm:$0xff]
    %v35 = vld [vmem:[%s0 + $0x38] sm:$0xff]
    %v36 = vld [vmem:[%s0 + $0x40] sm:$0xff]
    %v37 = vld [vmem:[%s0 + $0x48] sm:$0xff]
    %v38 = vld [vmem:[%s0 + $0x50] sm:$0xff]
    %v39 = vld [vmem:[%s0 + $0x58] sm:$0xff]
    %v40 = vld [vmem:[%s0 + $0x60] sm:$0xff]
    %v41 = vld [vmem:[%s0 + $0x68] sm:$0xff]
    %v42 = vld [vmem:[%s0 + $0x70] sm:$0xff]
    %v43 = vld [vmem:[%s0 + $0x78] sm:$0xff]
    %v44 = vld [vmem:[%s2] sm:$0xff]
    %v45 = vld [vmem:[%s2 + $0x8] sm:$0xff]
    %v46 = vld [vmem:[%s2 + $0x10] sm:$0xff]
    %v47 = vld [vmem:[%s2 + $0x18] sm:$0xff]
    %49 = vset.pattern.permute.xlu0 0
    %50 = vperm.xlu0 %49, %v44
    %v51 = vpop.permute.xlu0 %50
    %54 = vset.pattern.permute.xlu0 0
    %55 = vperm.xlu0 %54, %v45
    %v56 = vpop.permute.xlu0 %55
    %59 = vset.pattern.permute.xlu0 0
    %60 = vperm.xlu0 %59, %v46
    %v61 = vpop.permute.xlu0 %60
    %64 = vset.pattern.permute.xlu0 0
    %65 = vperm.xlu0 %64, %v47
    %v66 = vpop.permute.xlu0 %65
    %vm68 = vcmask 97280
    %v70 = vsel %vm68, %v24, 0
    %v73 = vsel %vm68, %v25, 0
    %v76 = vsel %vm68, %v26, 0
    %v79 = vsel %vm68, %v27, 0
    %v82 = vsel %vm68, %v28, 0
    %v85 = vsel %vm68, %v29, 0
    %v88 = vsel %vm68, %v30, 0
    %v91 = vsel %vm68, %v31, 0
    %v94 = vsel %vm68, %v32, 0
    %v97 = vsel %vm68, %v33, 0
    %v100 = vsel %vm68, %v34, 0
    %v103 = vsel %vm68, %v35, 0
    %v106 = vsel %vm68, %v36, 0
    %v109 = vsel %vm68, %v37, 0
    %v112 = vsel %vm68, %v38, 0
    %v115 = vsel %vm68, %v39, 0
    %v118 = vsel %vm68, %v40, 0
    %v121 = vsel %vm68, %v41, 0
    %v124 = vsel %vm68, %v42, 0
    %v127 = vsel %vm68, %v43, 0
    %129 = vmatprep.subr.mxu0 0.0
    %130 = vmatpush1.xpose.msra.mxu0 %v82
    %131 = vmatprep.subr.mxu0 0.0
    %132 = vmatpush1.xpose.msra.mxu0 %v85
    %133 = vmatprep.subr.mxu0 0.0
    %134 = vmatpush1.xpose.msra.mxu0 %v88
    %135 = vmatprep.subr.mxu0 0.0
    %136 = vmatpush1.xpose.msra.mxu0 %v91
    %137 = vmatprep.subr.mxu0 0.0
    %138 = vmatpush1.xpose.msra.mxu0 %v94
    %139 = vmatprep.subr.mxu0 0.0
    %140 = vmatpush1.xpose.msra.mxu0 %v97
    %141 = vmatprep.subr.mxu0 0.0
    %142 = vmatpush1.xpose.msra.mxu0 %v100
    %143 = vmatprep.subr.mxu0 0.0
    %144 = vmatpush1.xpose.msra.mxu0 %v103
    %145 = vmatprep.subr.mxu0 0.0
    %146 = vmatpush1.xpose.msra.mxu0 %v106
    %147 = vmatprep.subr.mxu0 0.0
    %148 = vmatpush1.xpose.msra.mxu0 %v109
    %149 = vmatprep.subr.mxu0 0.0
    %150 = vmatpush1.xpose.msra.mxu0 %v112
    %151 = vmatprep.subr.mxu0 0.0
    %152 = vmatpush1.xpose.msra.mxu0 %v115
    %153 = vmatprep.subr.mxu0 0.0
    %154 = vmatpush1.xpose.msra.mxu0 %v118
    %155 = vmatprep.subr.mxu0 0.0
    %156 = vmatpush1.xpose.msra.mxu0 %v121
    %157 = vmatprep.subr.mxu0 0.0
    %158 = vmatpush1.xpose.msra.mxu0 %v124
    %159 = vmatprep.subr.mxu0 0.0
    %160 = vmatpush1.xpose.msra.mxu0 %v127
    %161 = vmatprep.subr.mxu0 0.0
    %162 = vmatpush1.xpose.msra.mxu0 0.0
    %163 = vmatprep.subr.mxu0 0.0
    %164 = vmatpush1.xpose.msra.mxu0 0.0
    %165 = vmatprep.subr.mxu0 0.0
    %166 = vmatpush1.xpose.msra.mxu0 0.0
    %167 = vmatprep.subr.mxu0 0.0
    %168 = vmatpush1.xpose.msra.mxu0 0.0
    %169 = vmatprep.subr.mxu0 0.0
    %170 = vmatpush1.xpose.msra.mxu0 0.0
    %171 = vmatprep.subr.mxu0 0.0
    %172 = vmatpush1.xpose.msra.mxu0 0.0
    %173 = vmatprep.subr.mxu0 0.0
    %174 = vmatpush1.xpose.msra.mxu0 0.0
    %175 = vmatprep.subr.mxu0 0.0
    %176 = vmatpush1.xpose.msra.mxu0 0.0
    %177 = vmatprep.subr.mxu0 0.0
    %178 = vmatpush1.xpose.msra.mxu0 0.0
    %179 = vmatprep.subr.mxu0 0.0
    %180 = vmatpush1.xpose.msra.mxu0 0.0
    %181 = vmatprep.subr.mxu0 0.0
    %182 = vmatpush1.xpose.msra.mxu0 0.0
    %183 = vmatprep.subr.mxu0 0.0
    %184 = vmatpush1.xpose.msra.mxu0 0.0
    %185 = vmatprep.subr.mxu0 0.0
    %186 = vmatpush1.xpose.msra.mxu0 0.0
    %187 = vmatprep.subr.mxu0 0.0
    %188 = vmatpush1.xpose.msra.mxu0 0.0
    %189 = vmatprep.subr.mxu0 0.0
    %190 = vmatpush1.xpose.msra.mxu0 0.0
    %191 = vmatprep.subr.mxu0 0.0
    %192 = vmatpush1.xpose.msra.mxu0 0.0
    %193 = vmatprep.mubr.f32.mxu0 0.0
    %194 = vmatmul.mubr.f32.gmra.mrb[0].mxu0 %v70
    %v195 = vpop.f32.mrb[0].mxu0
    %v196 = vadd.f32 %v51, %v195
    %v197 = vpop.f32.mrb[0].mxu0
    %198 = vmatprep.mubr.f32.mxu0 0.0
    %199 = vmatmul.mubr.f32.gmra.mrb[0].mxu0 %v73
    %v200 = vpop.f32.mrb[0].mxu0
    %v201 = vadd.f32 %v56, %v200
    %v202 = vpop.f32.mrb[0].mxu0
    %203 = vmatprep.mubr.f32.mxu0 0.0
    %204 = vmatmul.mubr.f32.gmra.mrb[0].mxu0 %v76
    %v205 = vpop.f32.mrb[0].mxu0
    %v206 = vadd.f32 %v61, %v205
    %v207 = vpop.f32.mrb[0].mxu0
    %208 = vmatprep.mubr.f32.mxu0 0.0
    %209 = vmatmul.mubr.f32.gmra.mrb[0].mxu0 %v79
    %v210 = vpop.f32.mrb[0].mxu0
    %v211 = vadd.f32 %v66, %v210
    %v212 = vpop.f32.mrb[0].mxu0
    %213 = vdwg.mxu0
    %v214 = vmax.f32 %v196, 0.0
    %v215 = vmax.f32 %v201, 0.0
    %v216 = vmax.f32 %v206, 0.0
    %v217 = vmax.f32 %v211, 0.0
    %v218 = vld [vmem:[%s3] sm:$0xff]
    %v219 = vld [vmem:[%s3 + $0x8] sm:$0xff]
    %v220 = vld [vmem:[%s3 + $0x10] sm:$0xff]
    %v221 = vld [vmem:[%s3 + $0x18] sm:$0xff]
    %v222 = vld [vmem:[%s4] sm:$0xff]
    %v223 = vld [vmem:[%s4 + $0x8] sm:$0xff]
    %v224 = vld [vmem:[%s4 + $0x10] sm:$0xff]
    %v225 = vld [vmem:[%s4 + $0x18] sm:$0xff]
    %227 = vset.pattern.permute.xlu0 0
    %228 = vperm.xlu0 %227, %v222
    %v229 = vpop.permute.xlu0 %228
    %232 = vset.pattern.permute.xlu0 0
    %233 = vperm.xlu0 %232, %v223
    %v234 = vpop.permute.xlu0 %233
    %237 = vset.pattern.permute.xlu0 0
    %238 = vperm.xlu0 %237, %v224
    %v239 = vpop.permute.xlu0 %238
    %242 = vset.pattern.permute.xlu0 0
    %243 = vperm.xlu0 %242, %v225
    %v244 = vpop.permute.xlu0 %243
    %vm246 = vcmask 261120
    %v248 = vsel %vm246, %v218, 0
    %v251 = vsel %vm246, %v219, 0
    %v254 = vsel %vm246, %v220, 0
    %v257 = vsel %vm246, %v221, 0
    %259 = vmatprep.subr.mxu0 0.0
    %260 = vmatpush1.msra.mxu0 %v214
    %261 = vmatprep.subr.mxu0 0.0
    %262 = vmatpush1.msra.mxu0 %v215
    %263 = vmatprep.subr.mxu0 0.0
    %264 = vmatpush1.msra.mxu0 %v216
    %265 = vmatprep.subr.mxu0 0.0
    %266 = vmatpush1.msra.mxu0 %v217
    %267 = vmatprep.subr.mxu0 0.0
    %268 = vmatpush1.msra.mxu0 0.0
    %269 = vmatprep.subr.mxu0 0.0
    %270 = vmatpush1.msra.mxu0 0.0
    %271 = vmatprep.subr.mxu0 0.0
    %272 = vmatpush1.msra.mxu0 0.0
    %273 = vmatprep.subr.mxu0 0.0
    %274 = vmatpush1.msra.mxu0 0.0
    %275 = vmatprep.subr.mxu0 0.0
    %276 = vmatpush1.msra.mxu0 0.0
    %277 = vmatprep.subr.mxu0 0.0
    %278 = vmatpush1.msra.mxu0 0.0
    %279 = vmatprep.subr.mxu0 0.0
    %280 = vmatpush1.msra.mxu0 0.0
    %281 = vmatprep.subr.mxu0 0.0
    %282 = vmatpush1.msra.mxu0 0.0
    %283 = vmatprep.subr.mxu0 0.0
    %284 = vmatpush1.msra.mxu0 0.0
    %285 = vmatprep.subr.mxu0 0.0
    %286 = vmatpush1.msra.mxu0 0.0
    %287 = vmatprep.subr.mxu0 0.0
    %288 = vmatpush1.msra.mxu0 0.0
    %289 = vmatprep.subr.mxu0 0.0
    %290 = vmatpush1.msra.mxu0 0.0
    %291 = vmatprep.subr.mxu0 0.0
    %292 = vmatpush1.msra.mxu0 0.0
    %293 = vmatprep.subr.mxu0 0.0
    %294 = vmatpush1.msra.mxu0 0.0
    %295 = vmatprep.subr.mxu0 0.0
    %296 = vmatpush1.msra.mxu0 0.0
    %297 = vmatprep.subr.mxu0 0.0
    %298 = vmatpush1.msra.mxu0 0.0
    %299 = vmatprep.subr.mxu0 0.0
    %300 = vmatpush1.msra.mxu0 0.0
    %301 = vmatprep.subr.mxu0 0.0
    %302 = vmatpush1.msra.mxu0 0.0
    %303 = vmatprep.subr.mxu0 0.0
    %304 = vmatpush1.msra.mxu0 0.0
    %305 = vmatprep.subr.mxu0 0.0
    %306 = vmatpush1.msra.mxu0 0.0
    %307 = vmatprep.subr.mxu0 0.0
    %308 = vmatpush1.msra.mxu0 0.0
    %309 = vmatprep.subr.mxu0 0.0
    %310 = vmatpush1.msra.mxu0 0.0
    %311 = vmatprep.subr.mxu0 0.0
    %312 = vmatpush1.msra.mxu0 0.0
    %313 = vmatprep.subr.mxu0 0.0
    %314 = vmatpush1.msra.mxu0 0.0
    %315 = vmatprep.subr.mxu0 0.0
    %316 = vmatpush1.msra.mxu0 0.0
    %317 = vmatprep.subr.mxu0 0.0
    %318 = vmatpush1.msra.mxu0 0.0
    %319 = vmatprep.subr.mxu0 0.0
    %320 = vmatpush1.msra.mxu0 0.0
    %321 = vmatprep.subr.mxu0 0.0
    %322 = vmatpush1.msra.mxu0 0.0
    %323 = vmatprep.mubr.f32.mxu0 0.0
    %324 = vmatmul.mubr.f32.gmra.mrb[0].mxu0 %v248
    %v325 = vpop.f32.mrb[0].mxu0
    %v326 = vadd.f32 %v229, %v325
    %v327 = vpop.f32.mrb[0].mxu0
    %328 = vmatprep.mubr.f32.mxu0 0.0
    %329 = vmatmul.mubr.f32.gmra.mrb[0].mxu0 %v251
    %v330 = vpop.f32.mrb[0].mxu0
    %v331 = vadd.f32 %v234, %v330
    %v332 = vpop.f32.mrb[0].mxu0
    %333 = vmatprep.mubr.f32.mxu0 0.0
    %334 = vmatmul.mubr.f32.gmra.mrb[0].mxu0 %v254
    %v335 = vpop.f32.mrb[0].mxu0
    %v336 = vadd.f32 %v239, %v335
    %v337 = vpop.f32.mrb[0].mxu0
    %338 = vmatprep.mubr.f32.mxu0 0.0
    %339 = vmatmul.mubr.f32.gmra.mrb[0].mxu0 %v257
    %v340 = vpop.f32.mrb[0].mxu0
    %v341 = vadd.f32 %v244, %v340
    %v342 = vpop.f32.mrb[0].mxu0
    %343 = vdwg.mxu0
    %v344 = vmax.f32 %v326, 0.0
    %v345 = vmax.f32 %v331, 0.0
    %v346 = vmax.f32 %v336, 0.0
    %v347 = vmax.f32 %v341, 0.0
    %v348 = vld [vmem:[%s5] sm:$0xff]
    %v350 = vsel %vm246, %v348, 0
    %352 = vmatprep.subr.mxu0 0.0
    %353 = vmatpush1.msra.mxu0 %v344
    %354 = vmatprep.subr.mxu0 0.0
    %355 = vmatpush1.msra.mxu0 %v345
    %356 = vmatprep.subr.mxu0 0.0
    %357 = vmatpush1.msra.mxu0 %v346
    %358 = vmatprep.subr.mxu0 0.0
    %359 = vmatpush1.msra.mxu0 %v347
    %360 = vmatprep.subr.mxu0 0.0
    %361 = vmatpush1.msra.mxu0 0.0
    %362 = vmatprep.subr.mxu0 0.0
    %363 = vmatpush1.msra.mxu0 0.0
    %364 = vmatprep.subr.mxu0 0.0
    %365 = vmatpush1.msra.mxu0 0.0
    %366 = vmatprep.subr.mxu0 0.0
    %367 = vmatpush1.msra.mxu0 0.0
    %368 = vmatprep.subr.mxu0 0.0
    %369 = vmatpush1.msra.mxu0 0.0
    %370 = vmatprep.subr.mxu0 0.0
    %371 = vmatpush1.msra.mxu0 0.0
    %372 = vmatprep.subr.mxu0 0.0
    %373 = vmatpush1.msra.mxu0 0.0
    %374 = vmatprep.subr.mxu0 0.0
    %375 = vmatpush1.msra.mxu0 0.0
    %376 = vmatprep.subr.mxu0 0.0
    %377 = vmatpush1.msra.mxu0 0.0
    %378 = vmatprep.subr.mxu0 0.0
    %379 = vmatpush1.msra.mxu0 0.0
    %380 = vmatprep.subr.mxu0 0.0
    %381 = vmatpush1.msra.mxu0 0.0
    %382 = vmatprep.subr.mxu0 0.0
    %383 = vmatpush1.msra.mxu0 0.0
    %384 = vmatprep.subr.mxu0 0.0
    %385 = vmatpush1.msra.mxu0 0.0
    %386 = vmatprep.subr.mxu0 0.0
    %387 = vmatpush1.msra.mxu0 0.0
    %388 = vmatprep.subr.mxu0 0.0
    %389 = vmatpush1.msra.mxu0 0.0
    %390 = vmatprep.subr.mxu0 0.0
    %391 = vmatpush1.msra.mxu0 0.0
    %392 = vmatprep.subr.mxu0 0.0
    %393 = vmatpush1.msra.mxu0 0.0
    %394 = vmatprep.subr.mxu0 0.0
    %395 = vmatpush1.msra.mxu0 0.0
    %396 = vmatprep.subr.mxu0 0.0
    %397 = vmatpush1.msra.mxu0 0.0
    %398 = vmatprep.subr.mxu0 0.0
    %399 = vmatpush1.msra.mxu0 0.0
    %400 = vmatprep.subr.mxu0 0.0
    %401 = vmatpush1.msra.mxu0 0.0
    %402 = vmatprep.subr.mxu0 0.0
    %403 = vmatpush1.msra.mxu0 0.0
    %404 = vmatprep.subr.mxu0 0.0
    %405 = vmatpush1.msra.mxu0 0.0
    %406 = vmatprep.subr.mxu0 0.0
    %407 = vmatpush1.msra.mxu0 0.0
    %408 = vmatprep.subr.mxu0 0.0
    %409 = vmatpush1.msra.mxu0 0.0
    %410 = vmatprep.subr.mxu0 0.0
    %411 = vmatpush1.msra.mxu0 0.0
    %412 = vmatprep.subr.mxu0 0.0
    %413 = vmatpush1.msra.mxu0 0.0
    %414 = vmatprep.subr.mxu0 0.0
    %415 = vmatpush1.msra.mxu0 0.0
    %416 = vmatprep.mubr.f32.mxu0 0.0
    %417 = vmatmul.mubr.f32.gmra.mrb[0].mxu0 %v350
    %v418 = vpop.f32.mrb[0].mxu0
    %v419 = vadd.f32 0.0, %v418
    %v420 = vpop.f32.mrb[0].mxu0
    %421 = vdwg.mxu0
    %422 = vst [vmem:[#allocation2] sm:$0x1] %v419
    // Predicated region
    $region26: #{tpu_custom_call.1} parent=1 // pred_check
      _
    $region27: #{tpu_custom_call.1} parent=1 // pred_check_branch
      %424 = sbr.rel (0) target = $region29
    $region28: #{tpu_custom_call.1} parent=1 // pred_region
      %s426 = ssub.s32 16, 16
      %427 = vsyncadd [#allocation3], %s426
      %s429 = sshll.u32 [#allocation2], 4
      %s430 = int_to_ptr.vmem [resolvable:$true] %s429
      %432 = dma.vmem_to_hbm [thread:$0]  %s430, 16, %s6, [#allocation3]
    $region29: #{tpu_custom_call.1} parent=1 // pred_fallthru
      _
    // Predicated region
    $region30: #{tpu_custom_call.1} parent=1 // pred_check
      _
    $region31: #{tpu_custom_call.1} parent=1 // pred_check_branch
      %434 = sbr.rel (0) target = $region33
    $region32: #{tpu_custom_call.1} parent=1 // pred_region
      %435 = dma.done [#allocation3], 16
    $region33: #{tpu_custom_call.1} parent=1 // pred_fallthru
      _
    %436 = vsyncpa [#allocation3], 1

</llo_original>
